<compile_context>
chip_gen: v5e
topology: v5e:2x2
jax: 0.10.0
libtpu: 0.0.40
codegen_flags: <defaults>
</compile_context>

<pallas_src>
import jax
import jax.numpy as jnp
from jax.experimental import pallas as pl
from jax.experimental.pallas import tpu as pltpu

IN_FEATURES = 3
OUT_FEATURES = 5

LANE = 128          # lane width: tile batch size must be a multiple of this
TN_MAX = 8192       # ~96 KiB x-tile + ~160 KiB y-tile (f32) -> tiny vs VMEM on
                    # v5e/v6e/v7x even with double buffering


def mlp1_kernel(w_ref, b_ref, x_ref, o_ref):
    """w_ref: (5,3)  b_ref: (5,1)  x_ref: (3,TN)  o_ref: (5,TN)  (all f32).

    out[j, n] = tanh( sum_k w[j,k] * x[k,n] + b[j] )
    computed as 3 broadcast FMAs over (5, TN) — VPU only, no MXU staging.
    """
    tn = o_ref.shape[1]
    # Bias broadcast done once per tile (JAX does not CSE broadcast_in_dim).
    acc = jnp.broadcast_to(b_ref[...], (OUT_FEATURES, tn)).astype(jnp.float32)
    # Statically unrolled over the 3 input features.
    for k in range(IN_FEATURES):
        # (5,1) * (1,TN) -> (5,TN): lane-broadcast of the weight column,
        # sublane-broadcast of the x row; pure elementwise VPU work.
        acc = acc + w_ref[:, k:k + 1] * x_ref[k:k + 1, :]
    o_ref[...] = jnp.tanh(acc).astype(o_ref.dtype)


def mlp1_forward(x, w, b):
    """x: (N, 3) f32, w: (5, 3) f32 (PyTorch layout), b: (5,) f32 -> (N, 5) f32.

    Note: for genuinely tiny batches (a handful of rows) plain
    jnp.tanh(x @ w.T + b) beats any kernel launch; the Pallas path is kept
    unconditionally here so the kernel itself is exercised.
    """
    n = x.shape[0]

    # Tile size: multiple of 128 lanes, capped at TN_MAX.
    tn = min(TN_MAX, pl.cdiv(n, LANE) * LANE)
    n_pad = pl.cdiv(n, tn) * tn

    # Layout plumbing in the wrapper: batch onto the lane axis (+ tail pad).
    x_t = jnp.transpose(x)                                   # (3, N)
    if n_pad != n:
        x_t = jnp.pad(x_t, ((0, 0), (0, n_pad - n)))         # (3, N_pad)
    b2d = b.reshape(OUT_FEATURES, 1)                         # (5, 1)

    grid = (n_pad // tn,)

    y_t = pl.pallas_call(
        mlp1_kernel,
        out_shape=jax.ShapeDtypeStruct((OUT_FEATURES, n_pad), jnp.float32),
        grid=grid,
        in_specs=[
            # Weight / bias: full-array blocks, same block every grid step
            # -> stay resident in VMEM across the whole batch sweep.
            pl.BlockSpec((OUT_FEATURES, IN_FEATURES), lambda i: (0, 0)),
            pl.BlockSpec((OUT_FEATURES, 1), lambda i: (0, 0)),
            # Streaming, lane-dense x tile.
            pl.BlockSpec((IN_FEATURES, tn), lambda i: (0, i)),
        ],
        # Lane-dense output tile (unmasked vst).
        out_specs=pl.BlockSpec((OUT_FEATURES, tn), lambda i: (0, i)),
        compiler_params=pltpu.CompilerParams(
            dimension_semantics=("parallel",),
        ),
    )(w, b2d, x_t)

    # Drop tail padding, return in the module's (N, 5) layout.
    return jnp.transpose(y_t[:, :n])


def reference(x, w, b):
    return jnp.tanh(x @ w.T + b[None, :])


if __name__ == "__main__":
    key = jax.random.PRNGKey(0)
    kx, kw, kb, kx2 = jax.random.split(key, 4)

    # Deterministic synthetic parameters, shapes matching nn.Linear(3, 5):
    # PyTorch weight layout (out_features, in_features) = (5, 3).
    bound = 1.0 / jnp.sqrt(IN_FEATURES)
    w = jax.random.uniform(kw, (OUT_FEATURES, IN_FEATURES), jnp.float32,
                           -bound, bound)
    b = jax.random.uniform(kb, (OUT_FEATURES,), jnp.float32, -bound, bound)

    # Small shape implied by the module annotation ([-1, -1] f32): (batch, 3).
    x_small = jax.random.normal(kx, (8, IN_FEATURES), jnp.float32)
    out_small = jax.block_until_ready(mlp1_forward(x_small, w, b))
    assert out_small.shape == (8, OUT_FEATURES)
    assert jnp.allclose(out_small, reference(x_small, w, b),
                        atol=1e-5, rtol=1e-5)

    # Non-multiple-of-128 batch: exercises the tail-padding path.
    x_med = jax.random.normal(kx2, (300, IN_FEATURES), jnp.float32)
    out_med = jax.block_until_ready(mlp1_forward(x_med, w, b))
    assert out_med.shape == (300, OUT_FEATURES)
    assert jnp.allclose(out_med, reference(x_med, w, b),
                        atol=1e-5, rtol=1e-5)

    print("KERNEL_OK")
</pallas_src>

<mosaic_0001>
module attributes {stable_mosaic.version = 11 : i64} {
  func.func @mlp1_kernel(%arg0: i32, %arg1: memref<5x3xf32, #tpu.memory_space<vmem>>, %arg2: memref<5x1xf32, #tpu.memory_space<vmem>>, %arg3: memref<3x128xf32, #tpu.memory_space<vmem>>, %arg4: memref<5x128xf32, #tpu.memory_space<vmem>>) attributes {dimension_semantics = [#tpu.dimension_semantics<parallel>], iteration_bounds = array<i64: 1>, scalar_prefetch = 0 : i64, scratch_operands = 0 : i64, tpu.core_type = #tpu.core_type<tc>, window_params = [{pipeline_mode = #tpu.pipeline_mode<synchronous>, transform_indices = @transform_0, window_bounds = array<i64: 5, 3>}, {pipeline_mode = #tpu.pipeline_mode<synchronous>, transform_indices = @transform_1, window_bounds = array<i64: 5, 1>}, {transform_indices = @transform_2, window_bounds = array<i64: 3, 128>}, {transform_indices = @transform_3, window_bounds = array<i64: 5, 128>}]} {
    %c0 = arith.constant 0 : index
    %c0_0 = arith.constant 0 : index
    %0 = vector.load %arg2[%c0, %c0_0] : memref<5x1xf32, #tpu.memory_space<vmem>>, vector<5x1xf32>
    %1 = vector.shape_cast %0 : vector<5x1xf32> to vector<5x1xf32>
    %2 = vector.broadcast %1 : vector<5x1xf32> to vector<5x128xf32>
    %c0_1 = arith.constant 0 : index
    %c0_2 = arith.constant 0 : index
    %3 = vector.load %arg1[%c0_1, %c0_2] : memref<5x3xf32, #tpu.memory_space<vmem>>, vector<5x1xf32>
    %c0_3 = arith.constant 0 : index
    %c0_4 = arith.constant 0 : index
    %4 = vector.load %arg3[%c0_3, %c0_4] : memref<3x128xf32, #tpu.memory_space<vmem>>, vector<1x128xf32>
    %5 = vector.broadcast %3 : vector<5x1xf32> to vector<5x128xf32>
    %6 = vector.broadcast %4 : vector<1x128xf32> to vector<5x128xf32>
    %7 = arith.mulf %5, %6 : vector<5x128xf32>
    %8 = arith.addf %2, %7 : vector<5x128xf32>
    %c0_5 = arith.constant 0 : index
    %c1 = arith.constant 1 : index
    %9 = vector.load %arg1[%c0_5, %c1] : memref<5x3xf32, #tpu.memory_space<vmem>>, vector<5x1xf32>
    %c1_6 = arith.constant 1 : index
    %c0_7 = arith.constant 0 : index
    %10 = vector.load %arg3[%c1_6, %c0_7] : memref<3x128xf32, #tpu.memory_space<vmem>>, vector<1x128xf32>
    %11 = vector.broadcast %9 : vector<5x1xf32> to vector<5x128xf32>
    %12 = vector.broadcast %10 : vector<1x128xf32> to vector<5x128xf32>
    %13 = arith.mulf %11, %12 : vector<5x128xf32>
    %14 = arith.addf %8, %13 : vector<5x128xf32>
    %c0_8 = arith.constant 0 : index
    %c2 = arith.constant 2 : index
    %15 = vector.load %arg1[%c0_8, %c2] : memref<5x3xf32, #tpu.memory_space<vmem>>, vector<5x1xf32>
    %c2_9 = arith.constant 2 : index
    %c0_10 = arith.constant 0 : index
    %16 = vector.load %arg3[%c2_9, %c0_10] : memref<3x128xf32, #tpu.memory_space<vmem>>, vector<1x128xf32>
    %17 = vector.broadcast %15 : vector<5x1xf32> to vector<5x128xf32>
    %18 = vector.broadcast %16 : vector<1x128xf32> to vector<5x128xf32>
    %19 = arith.mulf %17, %18 : vector<5x128xf32>
    %20 = arith.addf %14, %19 : vector<5x128xf32>
    %21 = math.tanh %20 : vector<5x128xf32>
    %c0_11 = arith.constant 0 : index
    %c0_12 = arith.constant 0 : index
    %22 = vector.load %arg4[%c0_11, %c0_12] : memref<5x128xf32, #tpu.memory_space<vmem>>, vector<5x128xf32>
    tpu.vector_store %arg4[%c0_11, %c0_12], %21 {strides = array<i32>} : memref<5x128xf32, #tpu.memory_space<vmem>>, vector<5x128xf32>,
    return
  }
  func.func @transform_0(%arg0: i32) -> (i32, i32) {
    %c0_i32 = arith.constant 0 : i32
    %c0_i32_0 = arith.constant 0 : i32
    %c0_i32_1 = arith.constant 0 : i32
    return %c0_i32, %c0_i32_0 : i32, i32
  }
  func.func @transform_1(%arg0: i32) -> (i32, i32) {
    %c0_i32 = arith.constant 0 : i32
    %c0_i32_0 = arith.constant 0 : i32
    %c0_i32_1 = arith.constant 0 : i32
    return %c0_i32, %c0_i32_0 : i32, i32
  }
  func.func @transform_2(%arg0: i32) -> (i32, i32) {
    %c0_i32 = arith.constant 0 : i32
    %c0_i32_0 = arith.constant 0 : i32
    return %c0_i32, %arg0 : i32, i32
  }
  func.func @transform_3(%arg0: i32) -> (i32, i32) {
    %c0_i32 = arith.constant 0 : i32
    %c0_i32_0 = arith.constant 0 : i32
    return %c0_i32, %arg0 : i32, i32
  }
}

</mosaic_0001>

<llo_original>
// kernel: tpu_custom_call.1
$region0: #{tpu_custom_call.1}
  #allocation0 [shape = 'u32[]', space=smem, size = 0x4, offset = 0x4, fixed_abs, tag = 'smem constant byte address 0x4 - core index']
  #allocation1 [shape = 'u32[72,128]{1,0:T(1,128)}', space=vmem, size = 0x9000, scoped, tag = 'internal scratch']
  %s0 = inlined_call_operand.vmem [shape: f32[5,3], index: 0, kind: input, shape index: {}]
  %s1 = inlined_call_operand.vmem [shape: f32[5,1], index: 1, kind: input, shape index: {}]
  %s2 = inlined_call_operand.vmem [shape: f32[3,128], index: 2, kind: input, shape index: {}]
  %s3 = inlined_call_operand.hbm [shape: f32[5,128], index: 3, kind: output, shape index: {}]
  %s4 = sld [smem:[#allocation0]]
  $region22: #{tpu_custom_call.1} parent=0
    _
  %s6 = ssub.s32 1, %s4
  %s7 = scalar_select 0, %s6, %s4
  $region1: #{tpu_custom_call.1} parent=0
    #allocation2 [shape = 'u8[4096]{0}', space=vmem, size = 0x1000, scoped, tag = 'output window, operand 0, single buffered']
    #allocation3 [shape = 's32[1]{0}', space=sflag, size = 0x4, scoped, tag = 'scoped memory for tpu_custom_call.1']
    %8 = vsyncpa [#allocation3], 0
    // Predicated region
    $region2: #{tpu_custom_call.1} parent=1 // pred_check
      _
    $region3: #{tpu_custom_call.1} parent=1 // pred_check_branch
      %10 = sbr.rel (0) target = $region5
    $region4: #{tpu_custom_call.1} parent=1 // pred_region
      _
    $region5: #{tpu_custom_call.1} parent=1 // pred_fallthru
      _
    // Predicated region
    $region6: #{tpu_custom_call.1} parent=1 // pred_check
      _
    $region7: #{tpu_custom_call.1} parent=1 // pred_check_branch
      %12 = sbr.rel (0) target = $region9
    $region8: #{tpu_custom_call.1} parent=1 // pred_region
      _
    $region9: #{tpu_custom_call.1} parent=1 // pred_fallthru
      _
    // Predicated region
    $region10: #{tpu_custom_call.1} parent=1 // pred_check
      _
    $region11: #{tpu_custom_call.1} parent=1 // pred_check_branch
      %14 = sbr.rel (0) target = $region13
    $region12: #{tpu_custom_call.1} parent=1 // pred_region
      _
    $region13: #{tpu_custom_call.1} parent=1 // pred_fallthru
      _
    %v15 = vld [vmem:[%s1] sm:$0x1f]
    %17 = vset.pattern.permute.xlu0 0
    %18 = vperm.xlu0 %17, %v15
    %v19 = vpop.permute.xlu0 %18
    %v21 = vld [vmem:[%s0] sm:$0x1f]
    %v22 = vld [vmem:[%s2] sm:$0x1]
    %24 = vset.pattern.permute.xlu0 0
    %25 = vperm.xlu0 %24, %v21
    %v26 = vpop.permute.xlu0 %25
    %v28 = vperm.slane %v22, 0
    %v29 = vmul.f32 %v26, %v28
    %v30 = vadd.f32 %v19, %v29
    %v31 = vld [vmem:[%s2 + $0x1] sm:$0x1]
    %32 = vset.pattern.permute.xlu0 1
    %33 = vperm.xlu0 %32, %v21
    %v34 = vpop.permute.xlu0 %33
    %v36 = vperm.slane %v31, 0
    %v37 = vmul.f32 %v34, %v36
    %v38 = vadd.f32 %v30, %v37
    %v39 = vld [vmem:[%s2 + $0x2] sm:$0x1]
    %40 = vset.pattern.permute.xlu0 2
    %41 = vperm.xlu0 %40, %v21
    %v42 = vpop.permute.xlu0 %41
    %v44 = vperm.slane %v39, 0
    %v45 = vmul.f32 %v42, %v44
    %v46 = vadd.f32 %v38, %v45
    %v47 = vtanh.pop %v46
    %48 = vst [vmem:[#allocation2] sm:$0x1f] %v47
    // Predicated region
    $region14: #{tpu_custom_call.1} parent=1 // pred_check
      _
    $region15: #{tpu_custom_call.1} parent=1 // pred_check_branch
      %50 = sbr.rel (0) target = $region17
    $region16: #{tpu_custom_call.1} parent=1 // pred_region
      %52 = vsyncadd [#allocation3], 0
      %s54 = sshll.u32 [#allocation2], 4
      %s55 = int_to_ptr.vmem [resolvable:$true] %s54
      %s56 = sshll.u32 %s3, 4
      %s57 = int_to_ptr.hbm [resolvable:$true] %s56
      %59 = dma.vmem_to_hbm [thread:$0]  %s55, 128, %s57, [#allocation3]
    $region17: #{tpu_custom_call.1} parent=1 // pred_fallthru
      _
    // Predicated region
    $region18: #{tpu_custom_call.1} parent=1 // pred_check
      _
    $region19: #{tpu_custom_call.1} parent=1 // pred_check_branch
      %61 = sbr.rel (0) target = $region21
    $region20: #{tpu_custom_call.1} parent=1 // pred_region
      %63 = dma.done [#allocation3], 128
    $region21: #{tpu_custom_call.1} parent=1 // pred_fallthru
      _
    %64 = vsyncpa [#allocation3], 1

</llo_original>
